<compile_context>
chip_gen: v7x
topology: tpu7x:2x2x1
jax: 0.10.0
libtpu: 0.0.40
codegen_flags: <defaults>
</compile_context>

<pallas_src>
import jax
import jax.numpy as jnp
from jax.experimental import pallas as pl
from jax.experimental.pallas import tpu as pltpu

_LANES = 128
_VMEM_LIMIT = 32 * 1024 * 1024


def _copy_planes_kernel(xr_ref, xi_ref, out_r_ref, out_i_ref):
    # Pure dense copy of the two channel planes; the (optional) narrow -> f32
    # cast runs on the VPU and hides under the DMA.
    out_r_ref[...] = xr_ref[...].astype(out_r_ref.dtype)
    out_i_ref[...] = xi_ref[...].astype(out_i_ref.dtype)


def _sublane_multiple(dtype) -> int:
    # Packed-layout second-minor multiple: 8 for f32, 16 for bf16, 32 for fp8.
    return max(8, 32 // jnp.dtype(dtype).itemsize)


def _round_up(v, m):
    return ((v + m - 1) // m) * m


def _split_planes(x3, batch, chan_stride, max_tile_bytes):
    """x3: (batch*chan_stride, NR, 128); plane c of batch b is row b*chan_stride + c.

    Returns (real, imag) planes, each float32 of shape (batch, NR, 128).
    """
    rows, nr, lanes = x3.shape
    assert lanes == _LANES and rows == batch * chan_stride
    itemsize = jnp.dtype(x3.dtype).itemsize
    row_mult = _sublane_multiple(x3.dtype)

    # Dense-block row budget (per buffer), sized by the wider of in/out element.
    cap_rows = max_tile_bytes // (_LANES * max(4, itemsize))
    cap_rows = max(row_mult, cap_rows - cap_rows % row_mult)

    if nr <= cap_rows:
        tile_rows = nr                    # full second-minor dim: always legal
        grid_r = 1
    else:
        tile_rows = cap_rows
        grid_r = pl.cdiv(nr, tile_rows)

    # Keep >= 2 grid steps when there is enough work so a v7x megacore can
    # shard the "parallel" axes across both TensorCores.
    if batch * grid_r < 2 and nr >= 2 * row_mult:
        tile_rows = _round_up(pl.cdiv(nr, 2), row_mult)
        grid_r = pl.cdiv(nr, tile_rows)

    cs = chan_stride
    real_map = lambda b, r: (b * cs, r, 0)
    imag_map = lambda b, r: (b * cs + 1, r, 0)
    out_map = lambda b, r: (b, r, 0)

    plane_elems = batch * nr * _LANES
    cost = pl.CostEstimate(
        flops=0,
        transcendentals=0,
        bytes_accessed=2 * plane_elems * itemsize + 2 * plane_elems * 4,
    )

    out_r, out_i = pl.pallas_call(
        _copy_planes_kernel,
        out_shape=(
            jax.ShapeDtypeStruct((batch, nr, _LANES), jnp.float32),
            jax.ShapeDtypeStruct((batch, nr, _LANES), jnp.float32),
        ),
        grid=(batch, grid_r),
        in_specs=[
            pl.BlockSpec((1, tile_rows, _LANES), real_map),
            pl.BlockSpec((1, tile_rows, _LANES), imag_map),
        ],
        out_specs=(
            pl.BlockSpec((1, tile_rows, _LANES), out_map),
            pl.BlockSpec((1, tile_rows, _LANES), out_map),
        ),
        compiler_params=pltpu.CompilerParams(
            dimension_semantics=("parallel", "parallel"),
            vmem_limit_bytes=_VMEM_LIMIT,
        ),
        cost_estimate=cost,
    )(x3, x3)
    return out_r, out_i


def channels_to_complex(x, *, max_tile_bytes=2 * 1024 * 1024):
    """Pallas implementation of ChannelsToComplex.forward.

    x: (B, C, H, W) float array, C >= 2. Returns complex64 (B, H, W) equal to
    complex(x[:, 0], x[:, 1]).
    """
    B, C, H, W = x.shape
    assert C >= 2, "ChannelsToComplex needs at least 2 channels"
    N = H * W
    if not jnp.issubdtype(x.dtype, jnp.floating):
        x = x.astype(jnp.float32)   # defensive; torch.complex needs float input

    if N % _LANES == 0:
        # Free metadata view of the contiguous NCHW buffer; only rows b*C and
        # b*C + 1 (channels 0 and 1) are ever DMA'd by the kernel.
        nr = N // _LANES
        x3 = x.reshape(B * C, nr, _LANES)
        out_r, out_i = _split_planes(x3, B, C, max_tile_bytes)
        out_r = out_r.reshape(B, H, W)
        out_i = out_i.reshape(B, H, W)
    else:
        # Ragged spatial size: slice to the two needed channels and zero-pad the
        # flattened plane to a lane multiple (one extra XLA pass), then reuse
        # the same lane/sublane-dense kernel; padding is dropped afterwards.
        n_pad = _round_up(N, _LANES)
        nr = n_pad // _LANES
        x2 = jnp.pad(x[:, :2].reshape(B, 2, N), ((0, 0), (0, 0), (0, n_pad - N)))
        x3 = x2.reshape(B * 2, nr, _LANES)
        out_r, out_i = _split_planes(x3, B, 2, max_tile_bytes)
        out_r = out_r.reshape(B, n_pad)[:, :N].reshape(B, H, W)
        out_i = out_i.reshape(B, n_pad)[:, :N].reshape(B, H, W)

    # TODO(synk): complex64 packing has no Pallas/Mosaic equivalent and
    # lax.bitcast_convert_type rejects complex dtypes, so the interleave stays
    # as a single fused XLA pass over the kernel's two contiguous f32 planes.
    return jax.lax.complex(out_r, out_i)


if __name__ == "__main__":
    key = jax.random.PRNGKey(0)

    # 1) NCHW shape as used by the module, lane-aligned (H*W = 256).
    x = jax.random.normal(key, (2, 4, 16, 16), dtype=jnp.float32)
    out = jax.block_until_ready(channels_to_complex(x))
    ref = jax.lax.complex(x[:, 0], x[:, 1])
    assert out.shape == (2, 16, 16) and out.dtype == jnp.complex64
    assert bool(jnp.array_equal(out, ref)), "mismatch (aligned, C=4)"

    k1, k2, k3 = jax.random.split(key, 3)

    # 2) C == 2 exactly, lane-aligned (H*W = 128).
    x2 = jax.random.normal(k1, (2, 2, 16, 8), dtype=jnp.float32)
    out2 = jax.block_until_ready(channels_to_complex(x2))
    assert bool(jnp.array_equal(out2, jax.lax.complex(x2[:, 0], x2[:, 1]))), "mismatch (C=2)"

    # 3) B == 1: exercises the forced 2-step grid and the non-dividing tail block.
    x3 = jax.random.normal(k2, (1, 2, 40, 64), dtype=jnp.float32)
    out3 = jax.block_until_ready(channels_to_complex(x3))
    assert bool(jnp.array_equal(out3, jax.lax.complex(x3[:, 0], x3[:, 1]))), "mismatch (tail)"

    # 4) Ragged spatial size (H*W = 35): padded path reusing the same kernel.
    x4 = jax.random.normal(k3, (2, 3, 5, 7), dtype=jnp.float32)
    out4 = jax.block_until_ready(channels_to_complex(x4))
    assert bool(jnp.array_equal(out4, jax.lax.complex(x4[:, 0], x4[:, 1]))), "mismatch (ragged)"

    print("KERNEL_OK")
</pallas_src>

<mosaic_0001>
module attributes {stable_mosaic.version = 11 : i64} {
  func.func @_copy_planes_kernel(%arg0: i32, %arg1: i32, %arg2: memref<1x2x128xf32, #tpu.memory_space<vmem>>, %arg3: memref<1x2x128xf32, #tpu.memory_space<vmem>>, %arg4: memref<1x2x128xf32, #tpu.memory_space<vmem>>, %arg5: memref<1x2x128xf32, #tpu.memory_space<vmem>>) attributes {dimension_semantics = [#tpu.dimension_semantics<parallel>, #tpu.dimension_semantics<parallel>], iteration_bounds = array<i64: 2, 1>, scalar_prefetch = 0 : i64, scratch_operands = 0 : i64, tpu.core_type = #tpu.core_type<tc>, window_params = [{transform_indices = @transform_0, window_bounds = array<i64: 1, 2, 128>}, {transform_indices = @transform_1, window_bounds = array<i64: 1, 2, 128>}, {transform_indices = @transform_2, window_bounds = array<i64: 1, 2, 128>}, {transform_indices = @transform_3, window_bounds = array<i64: 1, 2, 128>}]} {
    %c0 = arith.constant 0 : index
    %c0_0 = arith.constant 0 : index
    %c0_1 = arith.constant 0 : index
    %0 = vector.load %arg2[%c0, %c0_0, %c0_1] : memref<1x2x128xf32, #tpu.memory_space<vmem>>, vector<1x2x128xf32>
    %c0_2 = arith.constant 0 : index
    %c0_3 = arith.constant 0 : index
    %c0_4 = arith.constant 0 : index
    %1 = vector.load %arg4[%c0_2, %c0_3, %c0_4] : memref<1x2x128xf32, #tpu.memory_space<vmem>>, vector<1x2x128xf32>
    tpu.vector_store %arg4[%c0_2, %c0_3, %c0_4], %0 {strides = array<i32>} : memref<1x2x128xf32, #tpu.memory_space<vmem>>, vector<1x2x128xf32>,
    %c0_5 = arith.constant 0 : index
    %c0_6 = arith.constant 0 : index
    %c0_7 = arith.constant 0 : index
    %2 = vector.load %arg3[%c0_5, %c0_6, %c0_7] : memref<1x2x128xf32, #tpu.memory_space<vmem>>, vector<1x2x128xf32>
    %c0_8 = arith.constant 0 : index
    %c0_9 = arith.constant 0 : index
    %c0_10 = arith.constant 0 : index
    %3 = vector.load %arg5[%c0_8, %c0_9, %c0_10] : memref<1x2x128xf32, #tpu.memory_space<vmem>>, vector<1x2x128xf32>
    tpu.vector_store %arg5[%c0_8, %c0_9, %c0_10], %2 {strides = array<i32>} : memref<1x2x128xf32, #tpu.memory_space<vmem>>, vector<1x2x128xf32>,
    return
  }
  func.func @transform_0(%arg0: i32, %arg1: i32) -> (i32, i32, i32) {
    %c4_i32 = arith.constant 4 : i32
    %0 = arith.muli %arg0, %c4_i32 : i32
    %c0_i32 = arith.constant 0 : i32
    %c0_i32_0 = arith.constant 0 : i32
    return %0, %arg1, %c0_i32 : i32, i32, i32
  }
  func.func @transform_1(%arg0: i32, %arg1: i32) -> (i32, i32, i32) {
    %c4_i32 = arith.constant 4 : i32
    %0 = arith.muli %arg0, %c4_i32 : i32
    %c1_i32 = arith.constant 1 : i32
    %1 = arith.addi %0, %c1_i32 : i32
    %c0_i32 = arith.constant 0 : i32
    %c0_i32_0 = arith.constant 0 : i32
    return %1, %arg1, %c0_i32 : i32, i32, i32
  }
  func.func @transform_2(%arg0: i32, %arg1: i32) -> (i32, i32, i32) {
    %c0_i32 = arith.constant 0 : i32
    %c0_i32_0 = arith.constant 0 : i32
    return %arg0, %arg1, %c0_i32 : i32, i32, i32
  }
  func.func @transform_3(%arg0: i32, %arg1: i32) -> (i32, i32, i32) {
    %c0_i32 = arith.constant 0 : i32
    %c0_i32_0 = arith.constant 0 : i32
    return %arg0, %arg1, %c0_i32 : i32, i32, i32
  }
}

</mosaic_0001>

<llo_original>
// kernel: tpu_custom_call.1
$region0: #{tpu_custom_call.1}
  #allocation0 [shape = 'u32[]', space=smem, size = 0x4, offset = 0x4, fixed_abs, tag = 'smem constant byte address 0x4 - core index']
  #allocation1 [shape = 'u32[144,128]{1,0:T(1,128)}', space=vmem, size = 0x12000, scoped, tag = 'internal scratch']
  %s0 = inlined_call_operand.hbm [shape: f32[8,2,128], index: 0, kind: input, shape index: {}]
  %s1 = inlined_call_operand.hbm [shape: f32[8,2,128], index: 1, kind: input, shape index: {}]
  %s2 = inlined_call_operand.hbm [shape: f32[2,2,128], index: 2, kind: output, shape index: {0}]
  %s3 = inlined_call_operand.hbm [shape: f32[2,2,128], index: 3, kind: output, shape index: {1}]
  %4 = xla_tuple %s2, %s3
  %s5 = sld [smem:[#allocation0]]
  $region57: #{tpu_custom_call.1} parent=0
    _
  %s7 = ssub.s32 1, %s5
  %s8 = scalar_select 0, %s7, %s5
  $region1: #{tpu_custom_call.1} parent=0
    #allocation2 [shape = 'u8[2048]{0}', space=vmem, size = 0x800, scoped, tag = 'input window, operand 0']
    #allocation3 [shape = 's32[2]{0}', space=sflag, size = 0x8, scoped, tag = 'scoped memory for tpu_custom_call.1']
    #allocation4 [shape = 's32[2]{0}', space=sflag, size = 0x8, scoped, tag = 'scoped memory for tpu_custom_call.1']
    #allocation5 [shape = 'u8[2048]{0}', space=vmem, size = 0x800, scoped, tag = 'input window, operand 1']
    #allocation6 [shape = 's32[2]{0}', space=sflag, size = 0x8, scoped, tag = 'scoped memory for tpu_custom_call.1']
    #allocation7 [shape = 'u8[2048]{0}', space=vmem, size = 0x800, scoped, tag = 'output window, operand 0']
    #allocation8 [shape = 'u8[2048]{0}', space=vmem, size = 0x800, scoped, tag = 'output window, operand 1']
    #allocation9 [shape = 's32[2]{0}', space=sflag, size = 0x8, scoped, tag = 'scoped memory for tpu_custom_call.1']
    %9 = vsyncpa [#allocation3], 0
    %s10 = scalar_lea.sflag [#allocation3], 1
    %11 = vsyncpa %s10, 0
    %12 = vsyncpa [#allocation6], 0
    %s13 = scalar_lea.sflag [#allocation6], 1
    %14 = vsyncpa %s13, 0
    %15 = vsyncpa [#allocation4], 0
    %s16 = scalar_lea.sflag [#allocation4], 1
    %17 = vsyncpa %s16, 0
    %18 = vsyncpa [#allocation9], 0
    %s19 = scalar_lea.sflag [#allocation9], 1
    %20 = vsyncpa %s19, 0
    loop: start=0, step=1, limit=4
    $region2: #{tpu_custom_call.1} parent=1 // loop_pre_header
      _
    $region3: #{tpu_custom_call.1} parent=1 // loop_header
      %s22 = sphi 0, %s26
      %p23 = scmp.ge.s32.totalorder %s22, 4
      %s29 = sphi 0, %s41
      %s30 = sphi 0, %s37
      %s31 = sphi 0, %s29
      %s32 = sphi 0, %s30
      %s33 = sphi 0, %s31
      %s34 = sphi 0, %s32
      %s48 = sphi 0, %s50
      %s51 = sphi 0, %s48
      %s52 = sphi 0, %s51
      %s68 = sphi 0, %s52
      %s80 = sphi 0, %s82
      %s83 = sphi 0, %s80
      %s84 = sphi 0, %s83
      %s100 = sphi 0, %s84
      %s108 = sphi 0, %s110
      %s111 = sphi 0, %s108
      %s112 = sphi 0, %s111
      %s128 = sphi 0, %s112
      %s136 = sphi 0, %s138
      %s139 = sphi 0, %s136
      %s140 = sphi 0, %s139
      %s156 = sphi 0, %s140
    $region4: #{tpu_custom_call.1} parent=1 // loop_header_branch
      %25 = sbr.rel (%p23) target = $region8
    $region5: #{tpu_custom_call.1} parent=1 // loop_body
      %s27 = ssub.s32 %s22, 1
      %s28 = ssub.s32 %s22, 2
      %s35 = sadd.s32 1, %s30
      %p36 = scmp.ge.s32.totalorder %s35, 1
      %s37 = scalar_select %p36, 0, %s35
      %s38 = sadd.s32 1, %s29
      %s39 = scalar_select %p36, %s38, %s29
      %p40 = scmp.ge.s32.totalorder %s39, 2
      %s41 = scalar_select %p40, 0, %s39
      %s42 = smul.u32 %s29, 4
      %s43 = smul.u32 %s41, 4
      %s44 = ssub.s32 %s42, %s43
      %s45 = ssub.s32 %s30, %s37
      %s46 = sor.u32 %s44, %s45
      %p47 = scmp.eq.s32.totalorder %s46, 0
      %s49 = sadd.s32 %s48, 1
      %s50 = scalar_select %p47, %s48, %s49
      %p53 = pneg %p47
      %p54 = scmp.eq.s32.totalorder %s22, 1
      %p55 = por %p53, %p54
      %p56 = scmp.ne.s32.totalorder %s48, %s51
      %p57 = scmp.eq.s32.totalorder %s22, 0
      %p58 = por %p56, %p57
      %p59 = scmp.ne.s32.totalorder %s48, %s51
      %p60 = scmp.eq.s32.totalorder %s27, 1
      %p61 = por %p59, %p60
      %p62 = scmp.ne.s32.totalorder %s51, %s52
      %p63 = scmp.eq.s32.totalorder %s27, 0
      %p64 = por %p62, %p63
      %p65 = scmp.ne.s32.totalorder %s51, %s52
      %p66 = scmp.eq.s32.totalorder %s28, 1
      %p67 = por %p65, %p66
      %p69 = scmp.ne.s32.totalorder %s52, %s68
      %p70 = scmp.eq.s32.totalorder %s28, 0
      %p71 = por %p69, %p70
      %s72 = smul.u32 %s29, 4
      %s73 = sadd.s32 %s72, 1
      %s74 = smul.u32 %s41, 4
      %s75 = sadd.s32 %s74, 1
      %s76 = ssub.s32 %s73, %s75
      %s77 = ssub.s32 %s30, %s37
      %s78 = sor.u32 %s76, %s77
      %p79 = scmp.eq.s32.totalorder %s78, 0
      %s81 = sadd.s32 %s80, 1
      %s82 = scalar_select %p79, %s80, %s81
      %p85 = pneg %p79
      %p86 = scmp.eq.s32.totalorder %s22, 1
      %p87 = por %p85, %p86
      %p88 = scmp.ne.s32.totalorder %s80, %s83
      %p89 = scmp.eq.s32.totalorder %s22, 0
      %p90 = por %p88, %p89
      %p91 = scmp.ne.s32.totalorder %s80, %s83
      %p92 = scmp.eq.s32.totalorder %s27, 1
      %p93 = por %p91, %p92
      %p94 = scmp.ne.s32.totalorder %s83, %s84
      %p95 = scmp.eq.s32.totalorder %s27, 0
      %p96 = por %p94, %p95
      %p97 = scmp.ne.s32.totalorder %s83, %s84
      %p98 = scmp.eq.s32.totalorder %s28, 1
      %p99 = por %p97, %p98
      %p101 = scmp.ne.s32.totalorder %s84, %s100
      %p102 = scmp.eq.s32.totalorder %s28, 0
      %p103 = por %p101, %p102
      %s104 = ssub.s32 %s29, %s41
      %s105 = ssub.s32 %s30, %s37
      %s106 = sor.u32 %s104, %s105
      %p107 = scmp.eq.s32.totalorder %s106, 0
      %s109 = sadd.s32 %s108, 1
      %s110 = scalar_select %p107, %s108, %s109
      %p113 = pneg %p107
      %p114 = scmp.eq.s32.totalorder %s22, 1
      %p115 = por %p113, %p114
      %p116 = scmp.ne.s32.totalorder %s108, %s111
      %p117 = scmp.eq.s32.totalorder %s22, 0
      %p118 = por %p116, %p117
      %p119 = scmp.ne.s32.totalorder %s108, %s111
      %p120 = scmp.eq.s32.totalorder %s27, 1
      %p121 = por %p119, %p120
      %p122 = scmp.ne.s32.totalorder %s111, %s112
      %p123 = scmp.eq.s32.totalorder %s27, 0
      %p124 = por %p122, %p123
      %p125 = scmp.ne.s32.totalorder %s111, %s112
      %p126 = scmp.eq.s32.totalorder %s28, 1
      %p127 = por %p125, %p126
      %p129 = scmp.ne.s32.totalorder %s112, %s128
      %p130 = scmp.eq.s32.totalorder %s28, 0
      %p131 = por %p129, %p130
      %s132 = ssub.s32 %s29, %s41
      %s133 = ssub.s32 %s30, %s37
      %s134 = sor.u32 %s132, %s133
      %p135 = scmp.eq.s32.totalorder %s134, 0
      %s137 = sadd.s32 %s136, 1
      %s138 = scalar_select %p135, %s136, %s137
      %p141 = pneg %p135
      %p142 = scmp.eq.s32.totalorder %s22, 1
      %p143 = por %p141, %p142
      %p144 = scmp.ne.s32.totalorder %s136, %s139
      %p145 = scmp.eq.s32.totalorder %s22, 0
      %p146 = por %p144, %p145
      %p147 = scmp.ne.s32.totalorder %s136, %s139
      %p148 = scmp.eq.s32.totalorder %s27, 1
      %p149 = por %p147, %p148
      %p150 = scmp.ne.s32.totalorder %s139, %s140
      %p151 = scmp.eq.s32.totalorder %s27, 0
      %p152 = por %p150, %p151
      %p153 = scmp.ne.s32.totalorder %s139, %s140
      %p154 = scmp.eq.s32.totalorder %s28, 1
      %p155 = por %p153, %p154
      %p157 = scmp.ne.s32.totalorder %s140, %s156
      %p158 = scmp.eq.s32.totalorder %s28, 0
      %p159 = por %p157, %p158
      %p160 = scmp.le.s32.totalorder 1, %s22
      %p161 = scmp.lt.s32.totalorder %s22, 3
      %p162 = pnand %p160, %p161
      %p163 = pneg %p162
      // Predicated region
      $region9: #{tpu_custom_call.1} parent=5 // pred_check
        _
      $region10: #{tpu_custom_call.1} parent=5 // pred_check_branch
        %165 = sbr.rel (%p162) target = $region12
      $region11: #{tpu_custom_call.1} parent=5 // pred_region
        %s166 = ssub.s32 %s22, 1
      $region12: #{tpu_custom_call.1} parent=5 // pred_fallthru
        _
      %p167 = scmp.lt.s32.totalorder %s22, 2
      // Predicated region
      $region13: #{tpu_custom_call.1} parent=5 // pred_check
        %p168 = pneg %p167
      $region14: #{tpu_custom_call.1} parent=5 // pred_check_branch
        %170 = sbr.rel (%p168) target = $region16
      $region15: #{tpu_custom_call.1} parent=5 // pred_region
        // Predicated region
        $region17: #{tpu_custom_call.1} parent=15 // pred_check
          %p171 = pneg %p58
        $region18: #{tpu_custom_call.1} parent=15 // pred_check_branch
          %173 = sbr.rel (%p171) target = $region20
        $region19: #{tpu_custom_call.1} parent=15 // pred_region
          %s174 = sand.u32 %s48, 1
          %s175 = scalar_lea.sflag [#allocation3], %s174
          %s176 = sand.u32 %s48, 1
          %s177 = smul.addr %s176, 2
          %s178 = scalar_lea.vmem [#allocation2], %s177
          %s179 = smul.u32 %s29, 4
          %s181 = ssub.s32 32, 32
          %182 = vsyncadd %s175, %s181
          %s183 = sadd.s32 %s30, %s179
          %s184 = smul.addr %s183, 32
          %s185 = scalar_lea.hbm %s0, %s184
          %s187 = sshll.u32 %s178, 4
          %s188 = int_to_ptr.vmem [resolvable:$true] %s187
          %190 = dma.hbm_to_vmem [thread:$0]  %s185, 32, %s188, %s175
        $region20: #{tpu_custom_call.1} parent=15 // pred_fallthru
          _
        // Predicated region
        $region21: #{tpu_custom_call.1} parent=15 // pred_check
          %p191 = pneg %p90
        $region22: #{tpu_custom_call.1} parent=15 // pred_check_branch
          %193 = sbr.rel (%p191) target = $region24
        $region23: #{tpu_custom_call.1} parent=15 // pred_region
          %s194 = sand.u32 %s80, 1
          %s195 = scalar_lea.sflag [#allocation6], %s194
          %s196 = sand.u32 %s80, 1
          %s197 = smul.addr %s196, 2
          %s198 = scalar_lea.vmem [#allocation5], %s197
          %s199 = smul.u32 %s29, 4
          %s200 = sadd.s32 %s199, 1
          %s202 = ssub.s32 32, 32
          %203 = vsyncadd %s195, %s202
          %s204 = sadd.s32 %s30, %s200
          %s205 = smul.addr %s204, 32
          %s206 = scalar_lea.hbm %s1, %s205
          %s208 = sshll.u32 %s198, 4
          %s209 = int_to_ptr.vmem [resolvable:$true] %s208
          %211 = dma.hbm_to_vmem [thread:$0]  %s206, 32, %s209, %s195
        $region24: #{tpu_custom_call.1} parent=15 // pred_fallthru
          _
      $region16: #{tpu_custom_call.1} parent=5 // pred_fallthru
        _
      %p212 = scmp.le.s32.totalorder 1, %s22
      %p213 = scmp.lt.s32.totalorder %s22, 3
      %p214 = pnand %p212, %p213
      %p215 = pneg %p214
      // Predicated region
      $region25: #{tpu_custom_call.1} parent=5 // pred_check
        _
      $region26: #{tpu_custom_call.1} parent=5 // pred_check_branch
        %217 = sbr.rel (%p214) target = $region28
      $region27: #{tpu_custom_call.1} parent=5 // pred_region
        %s218 = ssub.s32 %s22, 1
        %s219 = sand.u32 %s51, 1
        %s220 = scalar_lea.sflag [#allocation3], %s219
        %s221 = sand.u32 %s51, 1
        %s222 = smul.addr %s221, 2
        %s223 = scalar_lea.vmem [#allocation2], %s222
        // Predicated region
        $region29: #{tpu_custom_call.1} parent=27 // pred_check
          %p224 = pneg %p64
        $region30: #{tpu_custom_call.1} parent=27 // pred_check_branch
          %226 = sbr.rel (%p224) target = $region32
        $region31: #{tpu_custom_call.1} parent=27 // pred_region
          %227 = dma.done %s220, 32
        $region32: #{tpu_custom_call.1} parent=27 // pred_fallthru
          _
        %s228 = sand.u32 %s83, 1
        %s229 = scalar_lea.sflag [#allocation6], %s228
        %s230 = sand.u32 %s83, 1
        %s231 = smul.addr %s230, 2
        %s232 = scalar_lea.vmem [#allocation5], %s231
        // Predicated region
        $region33: #{tpu_custom_call.1} parent=27 // pred_check
          %p233 = pneg %p96
        $region34: #{tpu_custom_call.1} parent=27 // pred_check_branch
          %235 = sbr.rel (%p233) target = $region36
        $region35: #{tpu_custom_call.1} parent=27 // pred_region
          %236 = dma.done %s229, 32
        $region36: #{tpu_custom_call.1} parent=27 // pred_fallthru
          _
        %s237 = sand.u32 %s51, 1
        %s238 = scalar_lea.sflag [#allocation3], %s237
        %s239 = sand.u32 %s51, 1
        %s240 = smul.addr %s239, 2
        %s241 = scalar_lea.vmem [#allocation2], %s240
        %p242 = pneg %p64
        %p243 = pneg %p61
        %s244 = sand.u32 %s83, 1
        %s245 = scalar_lea.sflag [#allocation6], %s244
        %s246 = sand.u32 %s83, 1
        %s247 = smul.addr %s246, 2
        %s248 = scalar_lea.vmem [#allocation5], %s247
        %p249 = pneg %p96
        %p250 = pneg %p93
        %p251 = pneg %p124
        %p252 = pneg %p121
        %s253 = sand.u32 %s111, 1
        %s254 = scalar_lea.sflag [#allocation4], %s253
        %s255 = sand.u32 %s111, 1
        %s256 = smul.addr %s255, 2
        %s257 = scalar_lea.vmem [#allocation7], %s256
        %p258 = pneg %p152
        %p259 = pneg %p149
        %s260 = sand.u32 %s139, 1
        %s261 = scalar_lea.sflag [#allocation9], %s260
        %s262 = sand.u32 %s139, 1
        %s263 = smul.addr %s262, 2
        %s264 = scalar_lea.vmem [#allocation8], %s263
        %s265 = smul.u32 %s31, 4
        %s266 = smul.u32 %s31, 4
        %s267 = sadd.s32 %s266, 1
        %v268 = vld [vmem:[%s223] sm:$0x3]
        %269 = vst [vmem:[%s257] sm:$0x3] %v268
        %v270 = vld [vmem:[%s232] sm:$0x3]
        %271 = vst [vmem:[%s264] sm:$0x3] %v270
        %s272 = sand.u32 %s111, 1
        %s273 = scalar_lea.sflag [#allocation4], %s272
        %s274 = sand.u32 %s111, 1
        %s275 = smul.addr %s274, 2
        %s276 = scalar_lea.vmem [#allocation7], %s275
        %s277 = sand.u32 %s139, 1
        %s278 = scalar_lea.sflag [#allocation9], %s277
        %s279 = sand.u32 %s139, 1
        %s280 = smul.addr %s279, 2
        %s281 = scalar_lea.vmem [#allocation8], %s280
        // Predicated region
        $region37: #{tpu_custom_call.1} parent=27 // pred_check
          %p282 = pneg %p121
        $region38: #{tpu_custom_call.1} parent=27 // pred_check_branch
          %284 = sbr.rel (%p282) target = $region40
        $region39: #{tpu_custom_call.1} parent=27 // pred_region
          %s286 = ssub.s32 32, 32
          %287 = vsyncadd %s273, %s286
          %s288 = sadd.s32 %s32, %s31
          %s289 = smul.addr %s288, 32
          %s290 = scalar_lea.hbm %s2, %s289
          %s292 = sshll.u32 %s276, 4
          %s293 = int_to_ptr.vmem [resolvable:$true] %s292
          %295 = dma.vmem_to_hbm [thread:$0]  %s293, 32, %s290, %s273
        $region40: #{tpu_custom_call.1} parent=27 // pred_fallthru
          _
        // Predicated region
        $region41: #{tpu_custom_call.1} parent=27 // pred_check
          %p296 = pneg %p149
        $region42: #{tpu_custom_call.1} parent=27 // pred_check_branch
          %298 = sbr.rel (%p296) target = $region44
        $region43: #{tpu_custom_call.1} parent=27 // pred_region
          %s300 = ssub.s32 32, 32
          %301 = vsyncadd %s278, %s300
          %s302 = sadd.s32 %s32, %s31
          %s303 = smul.addr %s302, 32
          %s304 = scalar_lea.hbm %s3, %s303
          %s306 = sshll.u32 %s281, 4
          %s307 = int_to_ptr.vmem [resolvable:$true] %s306
          %309 = dma.vmem_to_hbm [thread:$0]  %s307, 32, %s304, %s278
        $region44: #{tpu_custom_call.1} parent=27 // pred_fallthru
          _
      $region28: #{tpu_custom_call.1} parent=5 // pred_fallthru
        _
      %p310 = scmp.le.s32.totalorder 2, %s22
      // Predicated region
      $region45: #{tpu_custom_call.1} parent=5 // pred_check
        %p311 = pneg %p310
      $region46: #{tpu_custom_call.1} parent=5 // pred_check_branch
        %313 = sbr.rel (%p311) target = $region48
      $region47: #{tpu_custom_call.1} parent=5 // pred_region
        %s314 = ssub.s32 %s22, 2
        // Predicated region
        $region49: #{tpu_custom_call.1} parent=47 // pred_check
          %p315 = pneg %p127
        $region50: #{tpu_custom_call.1} parent=47 // pred_check_branch
          %317 = sbr.rel (%p315) target = $region52
        $region51: #{tpu_custom_call.1} parent=47 // pred_region
          %s318 = sand.u32 %s112, 1
          %s319 = scalar_lea.sflag [#allocation4], %s318
          %s320 = sand.u32 %s112, 1
          %s321 = smul.addr %s320, 2
          %s322 = scalar_lea.vmem [#allocation7], %s321
          %323 = dma.done %s319, 32
        $region52: #{tpu_custom_call.1} parent=47 // pred_fallthru
          _
        // Predicated region
        $region53: #{tpu_custom_call.1} parent=47 // pred_check
          %p324 = pneg %p155
        $region54: #{tpu_custom_call.1} parent=47 // pred_check_branch
          %326 = sbr.rel (%p324) target = $region56
        $region55: #{tpu_custom_call.1} parent=47 // pred_region
          %s327 = sand.u32 %s140, 1
          %s328 = scalar_lea.sflag [#allocation9], %s327
          %s329 = sand.u32 %s140, 1
          %s330 = smul.addr %s329, 2
          %s331 = scalar_lea.vmem [#allocation8], %s330
          %332 = dma.done %s328, 32
        $region56: #{tpu_custom_call.1} parent=47 // pred_fallthru
          _
      $region48: #{tpu_custom_call.1} parent=5 // pred_fallthru
        _
    $region6: #{tpu_custom_call.1} parent=1 // loop_footer
      %s26 = sadd.s32 1, %s22
    $region7: #{tpu_custom_call.1} parent=1 // loop_footer_branch
      %21 = sbr.rel target = $region3
    $region8: #{tpu_custom_call.1} parent=1 // loop_exit
      _
    %333 = vsyncpa [#allocation3], 1
    %s334 = scalar_lea.sflag [#allocation3], 1
    %335 = vsyncpa %s334, 1
    %336 = vsyncpa [#allocation6], 1
    %s337 = scalar_lea.sflag [#allocation6], 1
    %338 = vsyncpa %s337, 1
    %339 = vsyncpa [#allocation4], 1
    %s340 = scalar_lea.sflag [#allocation4], 1
    %341 = vsyncpa %s340, 1
    %342 = vsyncpa [#allocation9], 1
    %s343 = scalar_lea.sflag [#allocation9], 1
    %344 = vsyncpa %s343, 1

</llo_original>
